<compile_context>
chip_gen: v5e
topology: v5e:2x2
jax: 0.10.0
libtpu: 0.0.40
codegen_flags: <defaults>
</compile_context>

<pallas_src>
import jax
import jax.numpy as jnp
from jax.experimental import pallas as pl
from jax.experimental.pallas import tpu as pltpu


_LANES = 512            # lane-dense tile width (multiple of 128)
_MAX_BLOCK_ROWS = 1024  # up to 1024*512*4B = 2 MiB per input tile


def _partial_sq_sum_kernel(x_ref, t_ref, o_ref):
    """Per-tile partial sum of squared differences.

    Computes (x - t)^2 in f32 for a (block_rows, _LANES) tile and reduces only
    along the leading axis (elementwise VPU adds across vregs; the minor
    (8, 128) layout is untouched by the reshape).  The result is this grid
    step's own (8, _LANES) lane-dense output block -- no cross-step carry, so
    the grid axis is parallel and the expensive cross-lane reduce runs exactly
    once, outside the kernel.
    """
    d = x_ref[...].astype(jnp.float32) - t_ref[...].astype(jnp.float32)
    sq = d * d
    rows, lanes = sq.shape
    o_ref[...] = sq.reshape(rows // 8, 8, lanes).sum(axis=0)


def clip_mse_loss(x, target, mask=None, query_labels=None, *,
                  small_input_threshold=1 << 16, force_pallas=False):
    """Pallas equivalent of clip_mse.forward. mask/query_labels are unused."""
    assert x.shape == target.shape, "x and target must have the same shape"

    if x.ndim == 3:
        B, C, D = x.shape
        divisor = B * D          # sum over dim=1, then mean over (B, D)
    elif x.ndim == 2:
        B, D = x.shape
        divisor = B              # sum over dim=-1, then mean over B
    else:
        raise ValueError(f"clip_mse expects 2D or 3D input, got ndim={x.ndim}")

    inv_divisor = 1.0 / float(divisor)
    n = x.size

    # Small-input fast path: the pallas_call fixed cost dwarfs the work here;
    # XLA fuses this trivially.  (Demo forces the kernel path explicitly.)
    if (not force_pallas) and n < small_input_threshold:
        d = x.astype(jnp.float32) - target.astype(jnp.float32)
        return jnp.sum(d * d) * inv_divisor

    # ---- layout: flatten to a lane-dense, zero-padded (rows_pad, 512) slab.
    rows = -(-n // _LANES)
    block_rows = min(_MAX_BLOCK_ROWS, ((rows + 7) // 8) * 8)
    rows_pad = -(-rows // block_rows) * block_rows
    pad = rows_pad * _LANES - n

    xf = x.reshape(-1)
    tf = target.reshape(-1)
    if pad:
        # Both padded with zeros -> (x - t)^2 contributes 0 for padded slots.
        xf = jnp.pad(xf, (0, pad))
        tf = jnp.pad(tf, (0, pad))
    x2 = xf.reshape(rows_pad, _LANES)
    t2 = tf.reshape(rows_pad, _LANES)

    num_tiles = rows_pad // block_rows

    partials = pl.pallas_call(
        _partial_sq_sum_kernel,
        out_shape=jax.ShapeDtypeStruct((num_tiles * 8, _LANES), jnp.float32),
        grid=(num_tiles,),
        in_specs=[
            pl.BlockSpec((block_rows, _LANES), lambda i: (i, 0)),
            pl.BlockSpec((block_rows, _LANES), lambda i: (i, 0)),
        ],
        out_specs=pl.BlockSpec((8, _LANES), lambda i: (i, 0)),
        compiler_params=pltpu.CompilerParams(
            # Each grid step writes its own output block; no carried state, so
            # the streaming reduction can be sharded across TensorCores (v7x).
            dimension_semantics=("parallel",),
            # ~8-13 MiB actually used (2 inputs x 2 buffers x <=2 MiB + temps);
            # explicit limit with headroom, safe on v5e/v6e/v7x.
            vmem_limit_bytes=32 * 1024 * 1024,
        ),
    )(x2, t2)

    # Single cross-lane/cross-sublane reduce + scale, on a tiny array.
    return jnp.sum(partials) * inv_divisor


def _reference(x, target):
    loss = jnp.square(x.astype(jnp.float32) - target.astype(jnp.float32))
    if loss.ndim == 3:
        loss = loss.sum(axis=1)
    else:
        loss = loss.sum(axis=-1)
    return loss.mean()


if __name__ == "__main__":
    key = jax.random.PRNGKey(0)
    k1, k2, k3 = jax.random.split(key, 3)

    # Small shapes consistent with the module's forward: 3D (B, C, D) case.
    B, C, D = 2, 4, 16
    x = jax.random.normal(k1, (B, C, D), dtype=jnp.float32)
    target = jax.random.normal(k2, (B, C, D), dtype=jnp.float32)
    mask = jnp.ones((B, D), dtype=jnp.float32)           # unused (parity with torch module)
    query_labels = jax.random.randint(k3, (B,), 0, 10)   # unused (parity with torch module)

    loss = clip_mse_loss(x, target, mask, query_labels, force_pallas=True)
    jax.block_until_ready(loss)
    ref = _reference(x, target)
    assert jnp.allclose(loss, ref, rtol=1e-5, atol=1e-5), (loss, ref)

    # 2D branch (sum over last dim, mean over batch).
    x2 = jax.random.normal(k1, (B, D), dtype=jnp.float32)
    t2 = jax.random.normal(k2, (B, D), dtype=jnp.float32)
    loss2 = clip_mse_loss(x2, t2, mask, query_labels, force_pallas=True)
    jax.block_until_ready(loss2)
    assert jnp.allclose(loss2, _reference(x2, t2), rtol=1e-5, atol=1e-5), (loss2,)

    # Larger 3D case exercising the multi-tile, lane-dense streaming path
    # (grid of 2 tiles of (1024, 512) f32 per input).
    xb = jax.random.normal(k1, (8, 256, 512), dtype=jnp.float32)
    tb = jax.random.normal(k2, (8, 256, 512), dtype=jnp.float32)
    loss3 = clip_mse_loss(xb, tb)
    jax.block_until_ready(loss3)
    ref3 = _reference(xb, tb)
    assert jnp.allclose(loss3, ref3, rtol=1e-4, atol=1e-4), (loss3, ref3)

    print("KERNEL_OK")
</pallas_src>

<mosaic_0001>
module attributes {stable_mosaic.version = 11 : i64} {
  func.func @_partial_sq_sum_kernel(%arg0: i32, %arg1: memref<8x512xf32, #tpu.memory_space<vmem>>, %arg2: memref<8x512xf32, #tpu.memory_space<vmem>>, %arg3: memref<8x512xf32, #tpu.memory_space<vmem>>) attributes {dimension_semantics = [#tpu.dimension_semantics<parallel>], iteration_bounds = array<i64: 1>, scalar_prefetch = 0 : i64, scratch_operands = 0 : i64, tpu.core_type = #tpu.core_type<tc>, window_params = [{transform_indices = @transform_0, window_bounds = array<i64: 8, 512>}, {transform_indices = @transform_1, window_bounds = array<i64: 8, 512>}, {transform_indices = @transform_2, window_bounds = array<i64: 8, 512>}]} {
    %c0 = arith.constant 0 : index
    %c0_0 = arith.constant 0 : index
    %0 = vector.load %arg1[%c0, %c0_0] : memref<8x512xf32, #tpu.memory_space<vmem>>, vector<8x512xf32>
    %c0_1 = arith.constant 0 : index
    %c0_2 = arith.constant 0 : index
    %1 = vector.load %arg2[%c0_1, %c0_2] : memref<8x512xf32, #tpu.memory_space<vmem>>, vector<8x512xf32>
    %2 = arith.subf %0, %1 : vector<8x512xf32>
    %3 = arith.mulf %2, %2 : vector<8x512xf32>
    %4 = vector.shape_cast %3 : vector<8x512xf32> to vector<1x8x512xf32>
    %cst = arith.constant dense<0.000000e+00> : vector<8x512xf32>
    %5 = vector.multi_reduction <add>, %4, %cst [0] : vector<1x8x512xf32> to vector<8x512xf32>
    %c0_3 = arith.constant 0 : index
    %c0_4 = arith.constant 0 : index
    %6 = vector.load %arg3[%c0_3, %c0_4] : memref<8x512xf32, #tpu.memory_space<vmem>>, vector<8x512xf32>
    tpu.vector_store %arg3[%c0_3, %c0_4], %5 {strides = array<i32>} : memref<8x512xf32, #tpu.memory_space<vmem>>, vector<8x512xf32>,
    return
  }
  func.func @transform_0(%arg0: i32) -> (i32, i32) {
    %c0_i32 = arith.constant 0 : i32
    %c0_i32_0 = arith.constant 0 : i32
    return %arg0, %c0_i32 : i32, i32
  }
  func.func @transform_1(%arg0: i32) -> (i32, i32) {
    %c0_i32 = arith.constant 0 : i32
    %c0_i32_0 = arith.constant 0 : i32
    return %arg0, %c0_i32 : i32, i32
  }
  func.func @transform_2(%arg0: i32) -> (i32, i32) {
    %c0_i32 = arith.constant 0 : i32
    %c0_i32_0 = arith.constant 0 : i32
    return %arg0, %c0_i32 : i32, i32
  }
}

</mosaic_0001>

<llo_original>
// kernel: tpu_custom_call.1
$region0: #{tpu_custom_call.1}
  #allocation0 [shape = 'u32[]', space=smem, size = 0x4, offset = 0x4, fixed_abs, tag = 'smem constant byte address 0x4 - core index']
  #allocation1 [shape = 'u32[72,128]{1,0:T(1,128)}', space=vmem, size = 0x9000, scoped, tag = 'internal scratch']
  %s0 = inlined_call_operand.hbm [shape: f32[8,512], index: 0, kind: input, shape index: {}]
  %s1 = inlined_call_operand.hbm [shape: f32[8,512], index: 1, kind: input, shape index: {}]
  %s2 = inlined_call_operand.hbm [shape: f32[8,512], index: 2, kind: output, shape index: {}]
  %s3 = sld [smem:[#allocation0]]
  $region26: #{tpu_custom_call.1} parent=0
    _
  %s5 = ssub.s32 1, %s3
  %s6 = scalar_select 0, %s5, %s3
  $region1: #{tpu_custom_call.1} parent=0
    #allocation2 [shape = 'u8[16384]{0}', space=vmem, size = 0x4000, scoped, tag = 'input window, operand 0, single buffered']
    #allocation3 [shape = 's32[1]{0}', space=sflag, size = 0x4, scoped, tag = 'scoped memory for tpu_custom_call.1']
    #allocation4 [shape = 's32[1]{0}', space=sflag, size = 0x4, scoped, tag = 'scoped memory for tpu_custom_call.1']
    #allocation5 [shape = 'u8[16384]{0}', space=vmem, size = 0x4000, scoped, tag = 'input window, operand 1, single buffered']
    #allocation6 [shape = 's32[1]{0}', space=sflag, size = 0x4, scoped, tag = 'scoped memory for tpu_custom_call.1']
    #allocation7 [shape = 'u8[16384]{0}', space=vmem, size = 0x4000, scoped, tag = 'output window, operand 0, single buffered']
    %7 = vsyncpa [#allocation3], 0
    %8 = vsyncpa [#allocation6], 0
    %9 = vsyncpa [#allocation4], 0
    // Predicated region
    $region2: #{tpu_custom_call.1} parent=1 // pred_check
      _
    $region3: #{tpu_custom_call.1} parent=1 // pred_check_branch
      %11 = sbr.rel (0) target = $region5
    $region4: #{tpu_custom_call.1} parent=1 // pred_region
      %13 = vsyncadd [#allocation3], 0
      %s15 = sshll.u32 %s0, 4
      %s16 = int_to_ptr.hbm [resolvable:$true] %s15
      %s17 = sshll.u32 [#allocation2], 4
      %s18 = int_to_ptr.vmem [resolvable:$true] %s17
      %20 = dma.hbm_to_vmem [thread:$0]  %s16, 512, %s18, [#allocation3]
    $region5: #{tpu_custom_call.1} parent=1 // pred_fallthru
      _
    // Predicated region
    $region6: #{tpu_custom_call.1} parent=1 // pred_check
      _
    $region7: #{tpu_custom_call.1} parent=1 // pred_check_branch
      %22 = sbr.rel (0) target = $region9
    $region8: #{tpu_custom_call.1} parent=1 // pred_region
      %24 = vsyncadd [#allocation6], 0
      %s26 = sshll.u32 %s1, 4
      %s27 = int_to_ptr.hbm [resolvable:$true] %s26
      %s28 = sshll.u32 [#allocation5], 4
      %s29 = int_to_ptr.vmem [resolvable:$true] %s28
      %31 = dma.hbm_to_vmem [thread:$0]  %s27, 512, %s29, [#allocation6]
    $region9: #{tpu_custom_call.1} parent=1 // pred_fallthru
      _
    // Predicated region
    $region10: #{tpu_custom_call.1} parent=1 // pred_check
      _
    $region11: #{tpu_custom_call.1} parent=1 // pred_check_branch
      %33 = sbr.rel (0) target = $region13
    $region12: #{tpu_custom_call.1} parent=1 // pred_region
      %35 = dma.done [#allocation3], 512
    $region13: #{tpu_custom_call.1} parent=1 // pred_fallthru
      _
    // Predicated region
    $region14: #{tpu_custom_call.1} parent=1 // pred_check
      _
    $region15: #{tpu_custom_call.1} parent=1 // pred_check_branch
      %37 = sbr.rel (0) target = $region17
    $region16: #{tpu_custom_call.1} parent=1 // pred_region
      %39 = dma.done [#allocation6], 512
    $region17: #{tpu_custom_call.1} parent=1 // pred_fallthru
      _
    %v40 = vld [vmem:[#allocation2] sm:$0xff]
    %v41 = vld [vmem:[#allocation2 + $0x8] sm:$0xff]
    %v42 = vld [vmem:[#allocation2 + $0x10] sm:$0xff]
    %v43 = vld [vmem:[#allocation2 + $0x18] sm:$0xff]
    %v44 = vld [vmem:[#allocation5] sm:$0xff]
    %v45 = vld [vmem:[#allocation5 + $0x8] sm:$0xff]
    %v46 = vld [vmem:[#allocation5 + $0x10] sm:$0xff]
    %v47 = vld [vmem:[#allocation5 + $0x18] sm:$0xff]
    %v48 = vsub.f32 %v40, %v44
    %v49 = vsub.f32 %v41, %v45
    %v50 = vsub.f32 %v42, %v46
    %v51 = vsub.f32 %v43, %v47
    %v52 = vmul.f32 %v48, %v48
    %v53 = vmul.f32 %v49, %v49
    %v54 = vmul.f32 %v50, %v50
    %v55 = vmul.f32 %v51, %v51
    %v56 = vadd.f32 %v52, 0.0
    %v57 = vadd.f32 %v53, 0.0
    %v58 = vadd.f32 %v54, 0.0
    %v59 = vadd.f32 %v55, 0.0
    %60 = vst [vmem:[#allocation7] sm:$0xff] %v56
    %61 = vst [vmem:[#allocation7 + $0x8] sm:$0xff] %v57
    %62 = vst [vmem:[#allocation7 + $0x10] sm:$0xff] %v58
    %63 = vst [vmem:[#allocation7 + $0x18] sm:$0xff] %v59
    // Predicated region
    $region18: #{tpu_custom_call.1} parent=1 // pred_check
      _
    $region19: #{tpu_custom_call.1} parent=1 // pred_check_branch
      %65 = sbr.rel (0) target = $region21
    $region20: #{tpu_custom_call.1} parent=1 // pred_region
      %67 = vsyncadd [#allocation4], 0
      %s69 = sshll.u32 [#allocation7], 4
      %s70 = int_to_ptr.vmem [resolvable:$true] %s69
      %s71 = sshll.u32 %s2, 4
      %s72 = int_to_ptr.hbm [resolvable:$true] %s71
      %74 = dma.vmem_to_hbm [thread:$0]  %s70, 512, %s72, [#allocation4]
    $region21: #{tpu_custom_call.1} parent=1 // pred_fallthru
      _
    // Predicated region
    $region22: #{tpu_custom_call.1} parent=1 // pred_check
      _
    $region23: #{tpu_custom_call.1} parent=1 // pred_check_branch
      %76 = sbr.rel (0) target = $region25
    $region24: #{tpu_custom_call.1} parent=1 // pred_region
      %78 = dma.done [#allocation4], 512
    $region25: #{tpu_custom_call.1} parent=1 // pred_fallthru
      _
    %79 = vsyncpa [#allocation3], 1
    %80 = vsyncpa [#allocation6], 1
    %81 = vsyncpa [#allocation4], 1

</llo_original>
